<compile_context>
chip_gen: v6e
topology: v6e:2x2x1
jax: 0.10.0
libtpu: 0.0.40
codegen_flags: <defaults>
</compile_context>

<pallas_src>
import functools

import jax
import jax.numpy as jnp
from jax.experimental import pallas as pl
from jax.experimental.pallas import tpu as pltpu


def _round_up(x, m):
    return ((x + m - 1) // m) * m


# --------------------------------------------------------------------------
# Pallas kernel: one row tile of  out = x @ w + b   (MXU matmul, f32 accum)
# --------------------------------------------------------------------------
def _affine_kernel(x_ref, w_ref, b_ref, o_ref):
    acc = jnp.dot(x_ref[...], w_ref[...], preferred_element_type=jnp.float32)
    o_ref[...] = (acc + b_ref[...]).astype(o_ref.dtype)


def affine_matmul(x, w_pad, b_pad, *, tile_m=2048, out_dtype=jnp.float32,
                  buffers=2):
    """y = x @ w_pad + b_pad via a single Pallas call, tiled over rows of x.

    x:     (M, K)    activations (K lane-aligned, here 256), f32 or bf16
    w_pad: (K, Np)   weight, output dim zero-padded to a multiple of 128
    b_pad: (1, Np)   bias (f32), zero-padded to match
    returns (M, Np) in out_dtype (accumulation is always f32 in-kernel).
    """
    M, K = x.shape
    Kp, Np = w_pad.shape
    assert K == Kp

    # Sublane packing granularity follows the activation dtype (bf16 packs 2
    # rows per sublane group -> round to 16 to keep loads/stores unmasked).
    sub = 16 if x.dtype == jnp.bfloat16 else 8

    # Padding rule: cap padded rows at < sub per tile, never inflate ~2x, and
    # avoid the wrapper-side jnp.pad (extra HBM pass) whenever possible.
    n_tiles = pl.cdiv(M, tile_m)
    # v7x has 2 TensorCores per chip: give the "parallel" grid axis >= 2 steps
    # for large batches so both cores get work (no effect on 1-TC v5e/v6e).
    if M >= 1024:
        n_tiles = max(n_tiles, 2)
    tm = _round_up(pl.cdiv(M, n_tiles), sub)
    m_pad = n_tiles * tm
    if m_pad != M:
        x = jnp.pad(x, ((0, m_pad - M), (0, 0)))
    grid = (n_tiles,)

    # Advisory cost hint, consistent with the actual dtypes in play.
    bytes_accessed = (m_pad * K * x.dtype.itemsize
                      + Kp * Np * w_pad.dtype.itemsize
                      + Np * b_pad.dtype.itemsize
                      + m_pad * Np * jnp.dtype(out_dtype).itemsize)
    cost = pl.CostEstimate(flops=2 * m_pad * K * Np, transcendentals=0,
                           bytes_accessed=bytes_accessed)

    # Streaming x tile; optionally deepen its pipeline (weights/bias are
    # grid-invariant so default buffering is already optimal for them).
    if buffers != 2 and hasattr(pl, "Buffered"):
        x_spec = pl.BlockSpec((tm, K), lambda i: (i, 0),
                              pipeline_mode=pl.Buffered(buffers))
    else:
        x_spec = pl.BlockSpec((tm, K), lambda i: (i, 0))

    out = pl.pallas_call(
        _affine_kernel,
        out_shape=jax.ShapeDtypeStruct((m_pad, Np), out_dtype),
        grid_spec=pltpu.PrefetchScalarGridSpec(
            num_scalar_prefetch=0,
            grid=grid,
            in_specs=[
                x_spec,                                       # row tile of x
                pl.BlockSpec((Kp, Np), lambda i: (0, 0)),     # whole weight
                pl.BlockSpec((1, Np), lambda i: (0, 0)),      # bias row
            ],
            out_specs=pl.BlockSpec((tm, Np), lambda i: (i, 0)),
        ),
        compiler_params=pltpu.CompilerParams(
            dimension_semantics=("parallel",),
        ),
        cost_estimate=cost,
    )(x, w_pad, b_pad)
    return out[:M]


# --------------------------------------------------------------------------
# One-time static fold of (conv -> flatten -> linear) into (W_eff, b_eff)
# --------------------------------------------------------------------------
def fold_simple_model_params(conv_w, conv_b, fc_w, fc_b, *, lane_pad=128,
                             weight_dtype=jnp.float32):
    """Fold PyTorch-layout params into a lane-padded affine map (model-load time).

    conv_w: (10, 1, 5, 5)   conv_b: (10,)
    fc_w:   (10, 1440)      fc_b:   (10,)
    Returns (w_pad (256, 128) in weight_dtype, b_pad (1, 128) f32, n_out=10).
    """
    conv_w = conv_w.astype(jnp.float32)
    conv_b = conv_b.astype(jnp.float32)
    fc_w = fc_w.astype(jnp.float32)
    fc_b = fc_b.astype(jnp.float32)

    CO, CI, KH, KW = conv_w.shape
    H = W = 16
    HO, WO = H - KH + 1, W - KW + 1            # 12, 12
    P = CI * H * W                             # 256 flattened input pixels
    NO = fc_w.shape[0]                         # 10 outputs

    # Push the 256 basis images through conv (no bias) -> flatten -> fc_w.T.
    # Exact (HIGHEST precision): this bakes the weights once, off the hot path.
    basis = jnp.eye(P, dtype=jnp.float32).reshape(P, CI, H, W)
    conv_basis = jax.lax.conv_general_dilated(
        basis, conv_w, window_strides=(1, 1), padding="VALID",
        dimension_numbers=("NCHW", "OIHW", "NCHW"),
        precision=jax.lax.Precision.HIGHEST,
    )                                           # (P, CO, HO, WO), NCHW flatten
    w_eff = jnp.dot(conv_basis.reshape(P, CO * HO * WO), fc_w.T,
                    precision=jax.lax.Precision.HIGHEST)        # (P, NO)

    bias_flat = jnp.broadcast_to(conv_b[:, None, None], (CO, HO, WO)).reshape(-1)
    b_eff = fc_b + jnp.dot(bias_flat, fc_w.T,
                           precision=jax.lax.Precision.HIGHEST)  # (NO,)

    # Lane-dense padding of the output dim (10 -> 128, minimum lane width) so
    # the kernel issues unmasked full-lane stores; wrapper slices back to NO.
    n_pad = _round_up(NO, lane_pad)
    w_pad = jnp.zeros((P, n_pad), jnp.float32).at[:, :NO].set(w_eff)
    w_pad = w_pad.astype(weight_dtype)          # one-time cast (not per-forward)
    b_pad = jnp.zeros((1, n_pad), jnp.float32).at[0, :NO].set(b_eff)
    return w_pad, b_pad, NO


# --------------------------------------------------------------------------
# Forward pass (hot path): one Pallas matmul, zero per-layer glue
# --------------------------------------------------------------------------
def simple_model_forward(x, w_pad, b_pad, n_out=10, *, tile_m=2048,
                         out_dtype=jnp.float32, buffers=2):
    """x: (N, 1, 16, 16) NCHW, f32 or (upstream-produced) bf16 -> (N, 10) f32.

    No dtype cast of x here: a wrapper-side astype would be an extra un-fused
    HBM pass. Feed bf16 activations only if the producer already emits bf16
    (and fold weights with weight_dtype=bf16).
    """
    N = x.shape[0]
    P = w_pad.shape[0]
    x2d = x.reshape(N, P)
    y = affine_matmul(x2d, w_pad, b_pad, tile_m=tile_m, out_dtype=out_dtype,
                      buffers=buffers)           # (N, 128) lane-dense
    return y[:, :n_out].astype(jnp.float32)


if __name__ == "__main__":
    key = jax.random.PRNGKey(0)
    k_x, k_cw, k_cb, k_fw, k_fb = jax.random.split(key, 5)

    N = 2
    x = jax.random.normal(k_x, (N, 1, 16, 16), dtype=jnp.float32)

    # Deterministic synthetic parameters in PyTorch layouts.
    conv_w = jax.random.normal(k_cw, (10, 1, 5, 5), dtype=jnp.float32) * 0.1
    conv_b = jax.random.normal(k_cb, (10,), dtype=jnp.float32) * 0.1
    fc_w = jax.random.normal(k_fw, (10, 10 * 12 * 12), dtype=jnp.float32) * 0.02
    fc_b = jax.random.normal(k_fb, (10,), dtype=jnp.float32) * 0.1

    # Pure-JAX reference of the original per-layer semantics (full precision).
    ref_conv = jax.lax.conv_general_dilated(
        x, conv_w, window_strides=(1, 1), padding="VALID",
        dimension_numbers=("NCHW", "OIHW", "NCHW"),
        precision=jax.lax.Precision.HIGHEST,
    ) + conv_b.reshape(1, 10, 1, 1)
    ref = jnp.dot(ref_conv.reshape(N, -1), fc_w.T,
                  precision=jax.lax.Precision.HIGHEST) + fc_b

    # ---- default fp32 path (exact module semantics) ----
    w_pad, b_pad, n_out = fold_simple_model_params(conv_w, conv_b, fc_w, fc_b)
    fwd = jax.jit(functools.partial(simple_model_forward, n_out=n_out))
    out = jax.block_until_ready(fwd(x, w_pad, b_pad))
    assert out.shape == (N, 10), out.shape
    assert jnp.allclose(out, ref, atol=1e-4, rtol=1e-4), \
        float(jnp.max(jnp.abs(out - ref)))

    # ---- bf16 fast path (upstream-bf16 activations, bf16 weights+writeback) ----
    w_pad_bf16, b_pad_f32, _ = fold_simple_model_params(
        conv_w, conv_b, fc_w, fc_b, weight_dtype=jnp.bfloat16)
    fwd_bf16 = jax.jit(functools.partial(
        simple_model_forward, n_out=n_out, out_dtype=jnp.bfloat16))
    out_bf16 = jax.block_until_ready(
        fwd_bf16(x.astype(jnp.bfloat16), w_pad_bf16, b_pad_f32))
    assert out_bf16.shape == (N, 10), out_bf16.shape
    # bf16 weights/activations/writeback with f32 accumulation: looser bound.
    assert jnp.allclose(out_bf16, ref, atol=5e-2, rtol=5e-2), \
        float(jnp.max(jnp.abs(out_bf16 - ref)))

    print("KERNEL_OK")
</pallas_src>

<mosaic_0001>
module attributes {stable_mosaic.version = 11 : i64} {
  func.func @_affine_kernel(%arg0: i32, %arg1: memref<8x256xf32, #tpu.memory_space<vmem>>, %arg2: memref<256x128xf32, #tpu.memory_space<vmem>>, %arg3: memref<1x128xf32, #tpu.memory_space<vmem>>, %arg4: memref<8x128xf32, #tpu.memory_space<vmem>>) attributes {dimension_semantics = [#tpu.dimension_semantics<parallel>], iteration_bounds = array<i64: 1>, scalar_prefetch = 0 : i64, scratch_operands = 0 : i64, tpu.core_type = #tpu.core_type<tc>, window_params = [{transform_indices = @transform_0, window_bounds = array<i64: 8, 256>}, {pipeline_mode = #tpu.pipeline_mode<synchronous>, transform_indices = @transform_1, window_bounds = array<i64: 256, 128>}, {pipeline_mode = #tpu.pipeline_mode<synchronous>, transform_indices = @transform_2, window_bounds = array<i64: 1, 128>}, {transform_indices = @transform_3, window_bounds = array<i64: 8, 128>}]} {
    %c0 = arith.constant 0 : index
    %c0_0 = arith.constant 0 : index
    %0 = vector.load %arg1[%c0, %c0_0] : memref<8x256xf32, #tpu.memory_space<vmem>>, vector<8x256xf32>
    %c0_1 = arith.constant 0 : index
    %c0_2 = arith.constant 0 : index
    %1 = vector.load %arg2[%c0_1, %c0_2] : memref<256x128xf32, #tpu.memory_space<vmem>>, vector<256x128xf32>
    %cst = arith.constant dense<0.000000e+00> : vector<8x128xf32>
    %2 = tpu.matmul %0, %1, %cst {dimension_numbers = #tpu.dot_dimension_numbers<[1], [0], [0], [1], [0, 0, 1, 1], [], []>} : vector<8x256xf32>, vector<256x128xf32>, vector<8x128xf32> -> vector<8x128xf32>
    %c0_3 = arith.constant 0 : index
    %c0_4 = arith.constant 0 : index
    %3 = vector.load %arg3[%c0_3, %c0_4] : memref<1x128xf32, #tpu.memory_space<vmem>>, vector<1x128xf32>
    %4 = vector.broadcast %3 : vector<1x128xf32> to vector<8x128xf32>
    %5 = arith.addf %2, %4 : vector<8x128xf32>
    %c0_5 = arith.constant 0 : index
    %c0_6 = arith.constant 0 : index
    %6 = vector.load %arg4[%c0_5, %c0_6] : memref<8x128xf32, #tpu.memory_space<vmem>>, vector<8x128xf32>
    tpu.vector_store %arg4[%c0_5, %c0_6], %5 {strides = array<i32>} : memref<8x128xf32, #tpu.memory_space<vmem>>, vector<8x128xf32>,
    return
  }
  func.func @transform_0(%arg0: i32) -> (i32, i32) {
    %c0_i32 = arith.constant 0 : i32
    %c0_i32_0 = arith.constant 0 : i32
    return %arg0, %c0_i32 : i32, i32
  }
  func.func @transform_1(%arg0: i32) -> (i32, i32) {
    %c0_i32 = arith.constant 0 : i32
    %c0_i32_0 = arith.constant 0 : i32
    %c0_i32_1 = arith.constant 0 : i32
    return %c0_i32, %c0_i32_0 : i32, i32
  }
  func.func @transform_2(%arg0: i32) -> (i32, i32) {
    %c0_i32 = arith.constant 0 : i32
    %c0_i32_0 = arith.constant 0 : i32
    %c0_i32_1 = arith.constant 0 : i32
    return %c0_i32, %c0_i32_0 : i32, i32
  }
  func.func @transform_3(%arg0: i32) -> (i32, i32) {
    %c0_i32 = arith.constant 0 : i32
    %c0_i32_0 = arith.constant 0 : i32
    return %arg0, %c0_i32 : i32, i32
  }
}

</mosaic_0001>

<llo_original>
// kernel: simple_model_forward.1
$region0: #{simple_model_forward.1}
  #allocation0 [shape = 'u32[]', space=smem, size = 0x4, offset = 0x4, fixed_abs, tag = 'smem constant byte address 0x4 - core index']
  #allocation1 [shape = 'u32[144,128]{1,0:T(1,128)}', space=vmem, size = 0x12000, scoped, tag = 'internal scratch']
  %s0 = inlined_call_operand.vmem [shape: f32[8,256], index: 0, kind: input, shape index: {}]
  %s1 = inlined_call_operand.hbm [shape: f32[256,128], index: 1, kind: input, shape index: {}]
  %s2 = inlined_call_operand.vmem [shape: f32[1,128], index: 2, kind: input, shape index: {}]
  %s3 = inlined_call_operand.vmem [shape: f32[8,128], index: 3, kind: output, shape index: {}]
  %s4 = sld [smem:[#allocation0]]
  $region26: #{simple_model_forward.1} parent=0
    _
  %s6 = ssub.s32 1, %s4
  %s7 = scalar_select 0, %s6, %s4
  $region1: #{simple_model_forward.1} parent=0
    #allocation2 [shape = 'u8[131072]{0}', space=vmem, size = 0x20000, scoped, tag = 'input window, operand 1, single buffered']
    #allocation3 [shape = 's32[1]{0}', space=sflag, size = 0x4, scoped, tag = 'scoped memory for simple_model_forward.1']
    %8 = vsyncpa [#allocation3], 0
    // Predicated region
    $region2: #{simple_model_forward.1} parent=1 // pred_check
      _
    $region3: #{simple_model_forward.1} parent=1 // pred_check_branch
      %10 = sbr.rel (0) target = $region5
    $region4: #{simple_model_forward.1} parent=1 // pred_region
      _
    $region5: #{simple_model_forward.1} parent=1 // pred_fallthru
      _
    // Predicated region
    $region6: #{simple_model_forward.1} parent=1 // pred_check
      _
    $region7: #{simple_model_forward.1} parent=1 // pred_check_branch
      %12 = sbr.rel (0) target = $region9
    $region8: #{simple_model_forward.1} parent=1 // pred_region
      %s14 = ssub.s32 4096, 4096
      %15 = vsyncadd [#allocation3], %s14
      %s16 = sshll.u32 [#allocation2], 4
      %s17 = int_to_ptr.vmem [resolvable:$true] %s16
      %22 = dma.hbm_to_vmem [thread:$0]  %s1, 4096, %s17, [#allocation3], 128, 128, 8
    $region9: #{simple_model_forward.1} parent=1 // pred_fallthru
      _
    // Predicated region
    $region10: #{simple_model_forward.1} parent=1 // pred_check
      _
    $region11: #{simple_model_forward.1} parent=1 // pred_check_branch
      %24 = sbr.rel (0) target = $region13
    $region12: #{simple_model_forward.1} parent=1 // pred_region
      _
    $region13: #{simple_model_forward.1} parent=1 // pred_fallthru
      _
    // Predicated region
    $region14: #{simple_model_forward.1} parent=1 // pred_check
      _
    $region15: #{simple_model_forward.1} parent=1 // pred_check_branch
      %26 = sbr.rel (0) target = $region17
    $region16: #{simple_model_forward.1} parent=1 // pred_region
      %27 = dma.done [#allocation3], 4096
    $region17: #{simple_model_forward.1} parent=1 // pred_fallthru
      _
    %v28 = vld [vmem:[%s0] sm:$0xff]
    %v29 = vld [vmem:[%s0 + $0x8] sm:$0xff]
    %v30 = vld [vmem:[#allocation2] sm:$0xff]
    %v31 = vld [vmem:[#allocation2 + $0x8] sm:$0xff]
    %v32 = vld [vmem:[#allocation2 + $0x10] sm:$0xff]
    %v33 = vld [vmem:[#allocation2 + $0x18] sm:$0xff]
    %v34 = vld [vmem:[#allocation2 + $0x20] sm:$0xff]
    %v35 = vld [vmem:[#allocation2 + $0x28] sm:$0xff]
    %v36 = vld [vmem:[#allocation2 + $0x30] sm:$0xff]
    %v37 = vld [vmem:[#allocation2 + $0x38] sm:$0xff]
    %v38 = vld [vmem:[#allocation2 + $0x40] sm:$0xff]
    %v39 = vld [vmem:[#allocation2 + $0x48] sm:$0xff]
    %v40 = vld [vmem:[#allocation2 + $0x50] sm:$0xff]
    %v41 = vld [vmem:[#allocation2 + $0x58] sm:$0xff]
    %v42 = vld [vmem:[#allocation2 + $0x60] sm:$0xff]
    %v43 = vld [vmem:[#allocation2 + $0x68] sm:$0xff]
    %v44 = vld [vmem:[#allocation2 + $0x70] sm:$0xff]
    %v45 = vld [vmem:[#allocation2 + $0x78] sm:$0xff]
    %v46 = vld [vmem:[#allocation2 + $0x80] sm:$0xff]
    %v47 = vld [vmem:[#allocation2 + $0x88] sm:$0xff]
    %v48 = vld [vmem:[#allocation2 + $0x90] sm:$0xff]
    %v49 = vld [vmem:[#allocation2 + $0x98] sm:$0xff]
    %v50 = vld [vmem:[#allocation2 + $0xa0] sm:$0xff]
    %v51 = vld [vmem:[#allocation2 + $0xa8] sm:$0xff]
    %v52 = vld [vmem:[#allocation2 + $0xb0] sm:$0xff]
    %v53 = vld [vmem:[#allocation2 + $0xb8] sm:$0xff]
    %v54 = vld [vmem:[#allocation2 + $0xc0] sm:$0xff]
    %v55 = vld [vmem:[#allocation2 + $0xc8] sm:$0xff]
    %v56 = vld [vmem:[#allocation2 + $0xd0] sm:$0xff]
    %v57 = vld [vmem:[#allocation2 + $0xd8] sm:$0xff]
    %v58 = vld [vmem:[#allocation2 + $0xe0] sm:$0xff]
    %v59 = vld [vmem:[#allocation2 + $0xe8] sm:$0xff]
    %v60 = vld [vmem:[#allocation2 + $0xf0] sm:$0xff]
    %v61 = vld [vmem:[#allocation2 + $0xf8] sm:$0xff]
    %v62 = vld [vmem:[%s2] sm:$0x1]
    %v64 = vlaneseq
    %v65 = vshrl.u32 %v64, 7
    %v66 = vsub.s32 0, %v65
    %v67 = vrot.slane %v62, %v66
    %69 = vmatprep.subr.mxu0 0.0
    %70 = vmatpush1.msra.mxu0 %v45
    %71 = vmatprep.subr.mxu0 0.0
    %72 = vmatpush1.msra.mxu0 %v44
    %73 = vmatprep.subr.mxu0 0.0
    %74 = vmatpush1.msra.mxu0 %v43
    %75 = vmatprep.subr.mxu0 0.0
    %76 = vmatpush1.msra.mxu0 %v42
    %77 = vmatprep.subr.mxu0 0.0
    %78 = vmatpush1.msra.mxu0 %v41
    %79 = vmatprep.subr.mxu0 0.0
    %80 = vmatpush1.msra.mxu0 %v40
    %81 = vmatprep.subr.mxu0 0.0
    %82 = vmatpush1.msra.mxu0 %v39
    %83 = vmatprep.subr.mxu0 0.0
    %84 = vmatpush1.msra.mxu0 %v38
    %85 = vmatprep.subr.mxu0 0.0
    %86 = vmatpush1.msra.mxu0 %v37
    %87 = vmatprep.subr.mxu0 0.0
    %88 = vmatpush1.msra.mxu0 %v36
    %89 = vmatprep.subr.mxu0 0.0
    %90 = vmatpush1.msra.mxu0 %v35
    %91 = vmatprep.subr.mxu0 0.0
    %92 = vmatpush1.msra.mxu0 %v34
    %93 = vmatprep.subr.mxu0 0.0
    %94 = vmatpush1.msra.mxu0 %v33
    %95 = vmatprep.subr.mxu0 0.0
    %96 = vmatpush1.msra.mxu0 %v32
    %97 = vmatprep.subr.mxu0 0.0
    %98 = vmatpush1.msra.mxu0 %v31
    %99 = vmatprep.subr.mxu0 0.0
    %100 = vmatpush1.msra.mxu0 %v30
    %101 = vmatprep.subr.mxu0 0.0
    %102 = vmatpush2.msra.mxu0 %v61
    %103 = vmatprep.subr.mxu0 0.0
    %104 = vmatpush2.msra.mxu0 %v60
    %105 = vmatprep.subr.mxu0 0.0
    %106 = vmatpush2.msra.mxu0 %v59
    %107 = vmatprep.subr.mxu0 0.0
    %108 = vmatpush2.msra.mxu0 %v58
    %109 = vmatprep.subr.mxu0 0.0
    %110 = vmatpush2.msra.mxu0 %v57
    %111 = vmatprep.subr.mxu0 0.0
    %112 = vmatpush2.msra.mxu0 %v56
    %113 = vmatprep.subr.mxu0 0.0
    %114 = vmatpush2.msra.mxu0 %v55
    %115 = vmatprep.subr.mxu0 0.0
    %116 = vmatpush2.msra.mxu0 %v54
    %117 = vmatprep.subr.mxu0 0.0
    %118 = vmatpush2.msra.mxu0 %v53
    %119 = vmatprep.subr.mxu0 0.0
    %120 = vmatpush2.msra.mxu0 %v52
    %121 = vmatprep.subr.mxu0 0.0
    %122 = vmatpush2.msra.mxu0 %v51
    %123 = vmatprep.subr.mxu0 0.0
    %124 = vmatpush2.msra.mxu0 %v50
    %125 = vmatprep.subr.mxu0 0.0
    %126 = vmatpush2.msra.mxu0 %v49
    %127 = vmatprep.subr.mxu0 0.0
    %128 = vmatpush2.msra.mxu0 %v48
    %129 = vmatprep.subr.mxu0 0.0
    %130 = vmatpush2.msra.mxu0 %v47
    %131 = vmatprep.subr.mxu0 0.0
    %132 = vmatpush2.msra.mxu0 %v46
    %133 = vmatprep.mubr.f32.mxu0 %v29
    %134 = vmatmul.mubr.f32.gmra.mxu0 %v28
    %v135 = vpop.f32.mrf.mxu0
    %v136 = vadd.f32 %v67, %v135
    %v137 = vpop.f32.mrf.mxu0
    %138 = vdwg.mxu0
    %139 = vst [vmem:[%s3] sm:$0xff] %v136
    // Predicated region
    $region18: #{simple_model_forward.1} parent=1 // pred_check
      _
    $region19: #{simple_model_forward.1} parent=1 // pred_check_branch
      %141 = sbr.rel (0) target = $region21
    $region20: #{simple_model_forward.1} parent=1 // pred_region
      _
    $region21: #{simple_model_forward.1} parent=1 // pred_fallthru
      _
    // Predicated region
    $region22: #{simple_model_forward.1} parent=1 // pred_check
      _
    $region23: #{simple_model_forward.1} parent=1 // pred_check_branch
      %143 = sbr.rel (0) target = $region25
    $region24: #{simple_model_forward.1} parent=1 // pred_region
      _
    $region25: #{simple_model_forward.1} parent=1 // pred_fallthru
      _
    %144 = vsyncpa [#allocation3], 1

</llo_original>
